<compile_context>
chip_gen: v7x
topology: tpu7x:2x2x1
jax: 0.10.0
libtpu: 0.0.40
codegen_flags: <defaults>
</compile_context>

<pallas_src>
import jax
import jax.numpy as jnp
from jax.experimental import pallas as pl
from jax.experimental.pallas import tpu as pltpu


def _round_up(x, m):
    return ((x + m - 1) // m) * m


def _vmem_capacity_bytes():
    """Per-core VMEM capacity; conservative fallback (v7x per-TC) if unknown."""
    try:
        info = pltpu.get_tpu_info()
        for attr in ("vmem_capacity_bytes", "vmem_size_bytes"):
            cap = getattr(info, attr, None)
            if cap:
                return int(cap)
    except Exception:
        pass
    return 64 * 1024 * 1024


def _make_attention_kernel(S, H, Sp, Hp):
    """Kernel closure; Sp/Hp are the lane-dense (128-padded) output widths."""

    def kernel(x_ref, w_ref, out_ref, aw_ref):
        # x_ref:  (Bt, S, H)  batch-tile of the LSTM output
        # w_ref:  (1, H)      attention projection weight (shared across batch)
        # out_ref:(Bt, Hp)    weighted outputs (lane-dense, padded with zeros)
        # aw_ref: (Bt, Sp)    softmax attention weights (lane-dense, padded)
        x = x_ref[...].astype(jnp.float32)           # (Bt, S, H)
        w = w_ref[...].astype(jnp.float32)           # (1, H)

        # scores = tanh(sum_h x * w)  -> (Bt, S); lane-reduce over H (VPU+XLU).
        wb = w[None, :, :]                           # (1, 1, H) hoisted broadcast
        scores = jnp.tanh(jnp.sum(x * wb, axis=-1))  # (Bt, S)

        # Numerically stable softmax over the sequence axis (exact normalize:
        # denom is only (Bt, 1), so the true divide is negligible).
        m = jnp.max(scores, axis=-1, keepdims=True)   # (Bt, 1)
        e = jnp.exp(scores - m)                       # (Bt, S)
        denom = jnp.sum(e, axis=-1, keepdims=True)    # (Bt, 1)
        inv = 1.0 / denom                             # (Bt, 1)

        aw = e * inv                                  # (Bt, S)

        # weighted = sum_s softmax(scores) * x  -> (Bt, H); fold 1/denom once
        # per (Bt, H) row instead of dividing the (Bt, S, H) product.
        weighted = jnp.sum(e[..., None] * x, axis=1) * inv   # (Bt, H)

        bt = weighted.shape[0]
        if Hp != H:
            weighted = jnp.concatenate(
                [weighted, jnp.zeros((bt, Hp - H), weighted.dtype)], axis=-1)
        if Sp != S:
            aw = jnp.concatenate(
                [aw, jnp.zeros((bt, Sp - S), aw.dtype)], axis=-1)

        out_ref[...] = weighted.astype(out_ref.dtype)
        aw_ref[...] = aw.astype(aw_ref.dtype)

    return kernel


def attention_forward(lstm_output, attn_weight, *, batch_tile=None):
    """lstm_output: (B, S, H); attn_weight: (1, H).

    Returns (weighted_output (B, H), attention_weights (B, S)).
    """
    B, S, H = lstm_output.shape
    assert attn_weight.shape == (1, H)

    # ---- lane/sublane-padded footprint bookkeeping -------------------------
    Hp = _round_up(H, 128)     # lane-dense output width for `out`
    Sp = _round_up(S, 128)     # lane-dense output width for `aw`
    S8 = _round_up(S, 8)       # sublane-padded S for the x tile

    vmem_cap = _vmem_capacity_bytes()
    x_row_f32 = S8 * Hp * 4                      # one batch row of x in VMEM (f32)
    out_row = (Hp + Sp) * 4                      # one batch row of both outputs
    # 2x double-buffered x DMA + ~2x f32 in-kernel temporaries (e[...,None]*x)
    # + 2x double-buffered output tiles.
    per_row_bytes = 4 * x_row_f32 + 2 * out_row
    budget = (vmem_cap * 3) // 8                 # keep aggregate well under VMEM

    # ---- pick batch tile size / step count ---------------------------------
    if batch_tile is None:
        bt_cap = max(8, (budget // per_row_bytes) // 8 * 8)
    else:
        bt_cap = _round_up(max(1, int(batch_tile)), 8)

    min_steps = 2 if B >= 2 else 1               # always give v7x's 2nd TC work
    num_steps = max(min_steps, -(-B // bt_cap))
    Bt = _round_up(-(-B // num_steps), 8)        # 8-aligned sublane dim
    num_steps = max(min_steps, -(-B // Bt))
    Bpad = num_steps * Bt

    x = lstm_output
    if Bpad != B:
        x = jnp.pad(x, ((0, Bpad - B), (0, 0), (0, 0)))

    # ---- BlockSpecs ---------------------------------------------------------
    x_tile_bytes = Bt * x_row_f32
    if num_steps >= 3 and x_tile_bytes < (2 << 20):
        # Tiny streaming tiles: deepen buffering to hide DMA issue latency.
        x_spec = pl.BlockSpec((Bt, S, H), lambda b: (b, 0, 0),
                              pipeline_mode=pl.Buffered(3))
    else:
        x_spec = pl.BlockSpec((Bt, S, H), lambda b: (b, 0, 0))

    vmem_limit = int(min(vmem_cap * 3 // 4, 100 * 1024 * 1024))

    out_shapes = (
        jax.ShapeDtypeStruct((Bpad, Hp), lstm_output.dtype),
        jax.ShapeDtypeStruct((Bpad, Sp), lstm_output.dtype),
    )

    out, aw = pl.pallas_call(
        _make_attention_kernel(S, H, Sp, Hp),
        out_shape=out_shapes,
        grid_spec=pltpu.PrefetchScalarGridSpec(
            num_scalar_prefetch=0,
            grid=(num_steps,),
            in_specs=[
                x_spec,
                pl.BlockSpec((1, H), lambda b: (0, 0)),
            ],
            out_specs=[
                pl.BlockSpec((Bt, Hp), lambda b: (b, 0)),
                pl.BlockSpec((Bt, Sp), lambda b: (b, 0)),
            ],
        ),
        compiler_params=pltpu.CompilerParams(
            dimension_semantics=("parallel",),
            vmem_limit_bytes=vmem_limit,
        ),
    )(x, attn_weight)

    return out[:B, :H], aw[:B, :S]


def attention_reference(lstm_output, attn_weight):
    """Pure-JAX reference mirroring the PyTorch forward."""
    scores = jnp.tanh(
        jnp.einsum("bsh,oh->bso", lstm_output, attn_weight)
    )[..., 0]                                        # (B, S)
    aw = jax.nn.softmax(scores, axis=1)              # (B, S)
    out = jnp.einsum("bs,bsh->bh", aw, lstm_output)  # (B, H)
    return out, aw


if __name__ == "__main__":
    key = jax.random.PRNGKey(0)
    k1, k2 = jax.random.split(key)

    B, S, H = 2, 8, 32
    lstm_output = jax.random.normal(k1, (B, S, H), dtype=jnp.float32)
    # Deterministic init for nn.Linear(hidden_dim, 1, bias=False) weight (1, H)
    attn_weight = jax.random.normal(k2, (1, H), dtype=jnp.float32) * 0.1

    out, aw = attention_forward(lstm_output, attn_weight)
    jax.block_until_ready(out)
    jax.block_until_ready(aw)

    ref_out, ref_aw = attention_reference(lstm_output, attn_weight)
    assert jnp.allclose(out, ref_out, atol=1e-4, rtol=1e-4), "weighted output mismatch"
    assert jnp.allclose(aw, ref_aw, atol=1e-4, rtol=1e-4), "attention weights mismatch"
    assert jnp.allclose(jnp.sum(aw, axis=1), 1.0, atol=1e-5), "softmax rows must sum to 1"

    print("KERNEL_OK")
</pallas_src>

<mosaic_0001>
module attributes {stable_mosaic.version = 11 : i64} {
  func.func @kernel(%arg0: i32, %arg1: memref<8x8x32xf32, #tpu.memory_space<vmem>>, %arg2: memref<1x32xf32, #tpu.memory_space<vmem>>, %arg3: memref<8x128xf32, #tpu.memory_space<vmem>>, %arg4: memref<8x128xf32, #tpu.memory_space<vmem>>) attributes {dimension_semantics = [#tpu.dimension_semantics<parallel>], iteration_bounds = array<i64: 2>, scalar_prefetch = 0 : i64, scratch_operands = 0 : i64, tpu.core_type = #tpu.core_type<tc>, window_params = [{transform_indices = @transform_0, window_bounds = array<i64: 8, 8, 32>}, {pipeline_mode = #tpu.pipeline_mode<synchronous>, transform_indices = @transform_1, window_bounds = array<i64: 1, 32>}, {transform_indices = @transform_2, window_bounds = array<i64: 8, 128>}, {transform_indices = @transform_3, window_bounds = array<i64: 8, 128>}]} {
    %c0 = arith.constant 0 : index
    %c0_0 = arith.constant 0 : index
    %c0_1 = arith.constant 0 : index
    %0 = vector.load %arg1[%c0, %c0_0, %c0_1] : memref<8x8x32xf32, #tpu.memory_space<vmem>>, vector<8x8x32xf32>
    %c0_2 = arith.constant 0 : index
    %c0_3 = arith.constant 0 : index
    %1 = vector.load %arg2[%c0_2, %c0_3] : memref<1x32xf32, #tpu.memory_space<vmem>>, vector<1x32xf32>
    %2 = vector.shape_cast %1 : vector<1x32xf32> to vector<1x1x32xf32>
    %3 = vector.broadcast %2 : vector<1x1x32xf32> to vector<8x8x32xf32>
    %4 = arith.mulf %0, %3 : vector<8x8x32xf32>
    %cst = arith.constant dense<0.000000e+00> : vector<8x8xf32>
    %5 = vector.multi_reduction <add>, %4, %cst [2] : vector<8x8x32xf32> to vector<8x8xf32>
    %6 = math.tanh %5 : vector<8x8xf32>
    %cst_4 = arith.constant dense<0xFF800000> : vector<8xf32>
    %7 = vector.multi_reduction <maximumf>, %6, %cst_4 [1] : vector<8x8xf32> to vector<8xf32>
    %8 = vector.shape_cast %7 : vector<8xf32> to vector<8x1xf32>
    %9 = vector.broadcast %8 : vector<8x1xf32> to vector<8x8xf32>
    %10 = arith.subf %6, %9 : vector<8x8xf32>
    %11 = math.exp %10 : vector<8x8xf32>
    %cst_5 = arith.constant dense<0.000000e+00> : vector<8xf32>
    %12 = vector.multi_reduction <add>, %11, %cst_5 [1] : vector<8x8xf32> to vector<8xf32>
    %13 = vector.shape_cast %12 : vector<8xf32> to vector<8x1xf32>
    %cst_6 = arith.constant 1.000000e+00 : f32
    %14 = vector.broadcast %cst_6 : f32 to vector<8x1xf32>
    %15 = arith.divf %14, %13 : vector<8x1xf32>
    %16 = vector.broadcast %15 : vector<8x1xf32> to vector<8x8xf32>
    %17 = arith.mulf %11, %16 : vector<8x8xf32>
    %18 = vector.shape_cast %11 : vector<8x8xf32> to vector<8x8x1xf32>
    %19 = vector.broadcast %18 : vector<8x8x1xf32> to vector<8x8x32xf32>
    %20 = arith.mulf %19, %0 : vector<8x8x32xf32>
    %cst_7 = arith.constant dense<0.000000e+00> : vector<8x32xf32>
    %21 = vector.multi_reduction <add>, %20, %cst_7 [1] : vector<8x8x32xf32> to vector<8x32xf32>
    %22 = vector.broadcast %15 : vector<8x1xf32> to vector<8x32xf32>
    %23 = arith.mulf %21, %22 : vector<8x32xf32>
    %cst_8 = arith.constant 0.000000e+00 : f32
    %24 = vector.broadcast %cst_8 : f32 to vector<8x96xf32>
    %25 = tpu.concatenate %23, %24 in 1 : vector<8x32xf32>, vector<8x96xf32> -> vector<8x128xf32>
    %cst_9 = arith.constant 0.000000e+00 : f32
    %26 = vector.broadcast %cst_9 : f32 to vector<8x120xf32>
    %27 = tpu.concatenate %17, %26 in 1 : vector<8x8xf32>, vector<8x120xf32> -> vector<8x128xf32>
    %c0_10 = arith.constant 0 : index
    %c0_11 = arith.constant 0 : index
    %28 = vector.load %arg3[%c0_10, %c0_11] : memref<8x128xf32, #tpu.memory_space<vmem>>, vector<8x128xf32>
    tpu.vector_store %arg3[%c0_10, %c0_11], %25 {strides = array<i32>} : memref<8x128xf32, #tpu.memory_space<vmem>>, vector<8x128xf32>,
    %c0_12 = arith.constant 0 : index
    %c0_13 = arith.constant 0 : index
    %29 = vector.load %arg4[%c0_12, %c0_13] : memref<8x128xf32, #tpu.memory_space<vmem>>, vector<8x128xf32>
    tpu.vector_store %arg4[%c0_12, %c0_13], %27 {strides = array<i32>} : memref<8x128xf32, #tpu.memory_space<vmem>>, vector<8x128xf32>,
    return
  }
  func.func @transform_0(%arg0: i32) -> (i32, i32, i32) {
    %c0_i32 = arith.constant 0 : i32
    %c0_i32_0 = arith.constant 0 : i32
    %c0_i32_1 = arith.constant 0 : i32
    return %arg0, %c0_i32, %c0_i32_0 : i32, i32, i32
  }
  func.func @transform_1(%arg0: i32) -> (i32, i32) {
    %c0_i32 = arith.constant 0 : i32
    %c0_i32_0 = arith.constant 0 : i32
    %c0_i32_1 = arith.constant 0 : i32
    return %c0_i32, %c0_i32_0 : i32, i32
  }
  func.func @transform_2(%arg0: i32) -> (i32, i32) {
    %c0_i32 = arith.constant 0 : i32
    %c0_i32_0 = arith.constant 0 : i32
    return %arg0, %c0_i32 : i32, i32
  }
  func.func @transform_3(%arg0: i32) -> (i32, i32) {
    %c0_i32 = arith.constant 0 : i32
    %c0_i32_0 = arith.constant 0 : i32
    return %arg0, %c0_i32 : i32, i32
  }
}

</mosaic_0001>

<llo_original>
// kernel: tpu_custom_call.1
$region0: #{tpu_custom_call.1}
  #allocation0 [shape = 'u32[]', space=smem, size = 0x4, offset = 0x4, fixed_abs, tag = 'smem constant byte address 0x4 - core index']
  #allocation1 [shape = 'u32[144,128]{1,0:T(1,128)}', space=vmem, size = 0x12000, scoped, tag = 'internal scratch']
  %s0 = inlined_call_operand.hbm [shape: f32[16,8,32], index: 0, kind: input, shape index: {}]
  %s1 = inlined_call_operand.vmem [shape: f32[1,32], index: 1, kind: input, shape index: {}]
  %s2 = inlined_call_operand.hbm [shape: f32[16,128], index: 2, kind: output, shape index: {0}]
  %s3 = inlined_call_operand.hbm [shape: f32[16,128], index: 3, kind: output, shape index: {1}]
  %4 = xla_tuple %s2, %s3
  %s5 = sld [smem:[#allocation0]]
  $region53: #{tpu_custom_call.1} parent=0
    _
  %s7 = ssub.s32 1, %s5
  %s8 = scalar_select 0, %s7, %s5
  $region1: #{tpu_custom_call.1} parent=0
    #allocation2 [shape = 'u8[65536]{0}', space=vmem, size = 0x10000, scoped, tag = 'input window, operand 0']
    #allocation3 [shape = 's32[2]{0}', space=sflag, size = 0x8, scoped, tag = 'scoped memory for tpu_custom_call.1']
    #allocation4 [shape = 's32[2]{0}', space=sflag, size = 0x8, scoped, tag = 'scoped memory for tpu_custom_call.1']
    #allocation5 [shape = 'u8[8192]{0}', space=vmem, size = 0x2000, scoped, tag = 'output window, operand 0']
    #allocation6 [shape = 'u8[8192]{0}', space=vmem, size = 0x2000, scoped, tag = 'output window, operand 1']
    #allocation7 [shape = 's32[2]{0}', space=sflag, size = 0x8, scoped, tag = 'scoped memory for tpu_custom_call.1']
    %9 = vsyncpa [#allocation3], 0
    %s10 = scalar_lea.sflag [#allocation3], 1
    %11 = vsyncpa %s10, 0
    %12 = vsyncpa [#allocation4], 0
    %s13 = scalar_lea.sflag [#allocation4], 1
    %14 = vsyncpa %s13, 0
    %15 = vsyncpa [#allocation7], 0
    %s16 = scalar_lea.sflag [#allocation7], 1
    %17 = vsyncpa %s16, 0
    loop: start=0, step=1, limit=4
    $region2: #{tpu_custom_call.1} parent=1 // loop_pre_header
      _
    $region3: #{tpu_custom_call.1} parent=1 // loop_header
      %s19 = sphi 0, %s23
      %p20 = scmp.ge.s32.totalorder %s19, 4
      %s29 = sphi 0, %s31
      %s32 = sphi 0, %s29
      %s33 = sphi 0, %s32
      %s49 = sphi 0, %s33
      %s53 = sphi 0, %s53
      %s55 = sphi 0, %s53
      %s56 = sphi 0, %s55
      %s70 = sphi 0, %s56
      %s76 = sphi 0, %s78
      %s79 = sphi 0, %s76
      %s80 = sphi 0, %s79
      %s96 = sphi 0, %s80
      %s102 = sphi 0, %s104
      %s105 = sphi 0, %s102
      %s106 = sphi 0, %s105
      %s122 = sphi 0, %s106
    $region4: #{tpu_custom_call.1} parent=1 // loop_header_branch
      %22 = sbr.rel (%p20) target = $region8
    $region5: #{tpu_custom_call.1} parent=1 // loop_body
      %s24 = ssub.s32 %s19, 1
      %s25 = ssub.s32 %s19, 2
      %s26 = sadd.s32 %s19, 1
      %s27 = ssub.s32 %s19, %s26
      %p28 = scmp.eq.s32.totalorder %s27, 0
      %s30 = sadd.s32 %s29, 1
      %s31 = scalar_select %p28, %s29, %s30
      %p34 = pneg %p28
      %p35 = scmp.eq.s32.totalorder %s19, 1
      %p36 = por %p34, %p35
      %p37 = scmp.ne.s32.totalorder %s29, %s32
      %p38 = scmp.eq.s32.totalorder %s19, 0
      %p39 = por %p37, %p38
      %p40 = scmp.ne.s32.totalorder %s29, %s32
      %p41 = scmp.eq.s32.totalorder %s24, 1
      %p42 = por %p40, %p41
      %p43 = scmp.ne.s32.totalorder %s32, %s33
      %p44 = scmp.eq.s32.totalorder %s24, 0
      %p45 = por %p43, %p44
      %p46 = scmp.ne.s32.totalorder %s32, %s33
      %p47 = scmp.eq.s32.totalorder %s25, 1
      %p48 = por %p46, %p47
      %p50 = scmp.ne.s32.totalorder %s33, %s49
      %p51 = scmp.eq.s32.totalorder %s25, 0
      %p52 = por %p50, %p51
      %s54 = sadd.s32 %s53, 1
      %p57 = scmp.eq.s32.totalorder %s19, 1
      %p58 = scmp.ne.s32.totalorder %s53, %s55
      %p59 = scmp.eq.s32.totalorder %s19, 0
      %p60 = por %p58, %p59
      %p61 = scmp.ne.s32.totalorder %s53, %s55
      %p62 = scmp.eq.s32.totalorder %s24, 1
      %p63 = por %p61, %p62
      %p64 = scmp.ne.s32.totalorder %s55, %s56
      %p65 = scmp.eq.s32.totalorder %s24, 0
      %p66 = por %p64, %p65
      %p67 = scmp.ne.s32.totalorder %s55, %s56
      %p68 = scmp.eq.s32.totalorder %s25, 1
      %p69 = por %p67, %p68
      %p71 = scmp.ne.s32.totalorder %s56, %s70
      %p72 = scmp.eq.s32.totalorder %s25, 0
      %p73 = por %p71, %p72
      %s74 = ssub.s32 %s19, %s26
      %p75 = scmp.eq.s32.totalorder %s74, 0
      %s77 = sadd.s32 %s76, 1
      %s78 = scalar_select %p75, %s76, %s77
      %p81 = pneg %p75
      %p82 = scmp.eq.s32.totalorder %s19, 1
      %p83 = por %p81, %p82
      %p84 = scmp.ne.s32.totalorder %s76, %s79
      %p85 = scmp.eq.s32.totalorder %s19, 0
      %p86 = por %p84, %p85
      %p87 = scmp.ne.s32.totalorder %s76, %s79
      %p88 = scmp.eq.s32.totalorder %s24, 1
      %p89 = por %p87, %p88
      %p90 = scmp.ne.s32.totalorder %s79, %s80
      %p91 = scmp.eq.s32.totalorder %s24, 0
      %p92 = por %p90, %p91
      %p93 = scmp.ne.s32.totalorder %s79, %s80
      %p94 = scmp.eq.s32.totalorder %s25, 1
      %p95 = por %p93, %p94
      %p97 = scmp.ne.s32.totalorder %s80, %s96
      %p98 = scmp.eq.s32.totalorder %s25, 0
      %p99 = por %p97, %p98
      %s100 = ssub.s32 %s19, %s26
      %p101 = scmp.eq.s32.totalorder %s100, 0
      %s103 = sadd.s32 %s102, 1
      %s104 = scalar_select %p101, %s102, %s103
      %p107 = pneg %p101
      %p108 = scmp.eq.s32.totalorder %s19, 1
      %p109 = por %p107, %p108
      %p110 = scmp.ne.s32.totalorder %s102, %s105
      %p111 = scmp.eq.s32.totalorder %s19, 0
      %p112 = por %p110, %p111
      %p113 = scmp.ne.s32.totalorder %s102, %s105
      %p114 = scmp.eq.s32.totalorder %s24, 1
      %p115 = por %p113, %p114
      %p116 = scmp.ne.s32.totalorder %s105, %s106
      %p117 = scmp.eq.s32.totalorder %s24, 0
      %p118 = por %p116, %p117
      %p119 = scmp.ne.s32.totalorder %s105, %s106
      %p120 = scmp.eq.s32.totalorder %s25, 1
      %p121 = por %p119, %p120
      %p123 = scmp.ne.s32.totalorder %s106, %s122
      %p124 = scmp.eq.s32.totalorder %s25, 0
      %p125 = por %p123, %p124
      %p126 = scmp.le.s32.totalorder 1, %s19
      %p127 = scmp.lt.s32.totalorder %s19, 3
      %p128 = pnand %p126, %p127
      %p129 = pneg %p128
      // Predicated region
      $region9: #{tpu_custom_call.1} parent=5 // pred_check
        _
      $region10: #{tpu_custom_call.1} parent=5 // pred_check_branch
        %131 = sbr.rel (%p128) target = $region12
      $region11: #{tpu_custom_call.1} parent=5 // pred_region
        %s132 = ssub.s32 %s19, 1
        // Predicated region
        $region13: #{tpu_custom_call.1} parent=11 // pred_check
          %p133 = pneg %p66
        $region14: #{tpu_custom_call.1} parent=11 // pred_check_branch
          %135 = sbr.rel (%p133) target = $region16
        $region15: #{tpu_custom_call.1} parent=11 // pred_region
          _
        $region16: #{tpu_custom_call.1} parent=11 // pred_fallthru
          _
      $region12: #{tpu_custom_call.1} parent=5 // pred_fallthru
        _
      %p136 = scmp.lt.s32.totalorder %s19, 2
      // Predicated region
      $region17: #{tpu_custom_call.1} parent=5 // pred_check
        %p137 = pneg %p136
      $region18: #{tpu_custom_call.1} parent=5 // pred_check_branch
        %139 = sbr.rel (%p137) target = $region20
      $region19: #{tpu_custom_call.1} parent=5 // pred_region
        // Predicated region
        $region21: #{tpu_custom_call.1} parent=19 // pred_check
          %p140 = pneg %p39
        $region22: #{tpu_custom_call.1} parent=19 // pred_check_branch
          %142 = sbr.rel (%p140) target = $region24
        $region23: #{tpu_custom_call.1} parent=19 // pred_region
          %s143 = sand.u32 %s29, 1
          %s144 = scalar_lea.sflag [#allocation3], %s143
          %s145 = sand.u32 %s29, 1
          %s146 = smul.addr %s145, 64
          %s147 = scalar_lea.vmem [#allocation2], %s146
          %s148 = smul.u32 8, %s19
          %s150 = ssub.s32 1024, 1024
          %151 = vsyncadd %s144, %s150
          %s152 = smul.addr %s148, 128
          %s153 = scalar_lea.hbm %s0, %s152
          %s154 = sshll.u32 %s147, 4
          %s155 = int_to_ptr.vmem [resolvable:$true] %s154
          %160 = dma.hbm_to_vmem [thread:$0]  %s153, 1024, %s155, %s144, 128, 128, 8
        $region24: #{tpu_custom_call.1} parent=19 // pred_fallthru
          _
      $region20: #{tpu_custom_call.1} parent=5 // pred_fallthru
        _
      %p161 = scmp.le.s32.totalorder 1, %s19
      %p162 = scmp.lt.s32.totalorder %s19, 3
      %p163 = pnand %p161, %p162
      %p164 = pneg %p163
      // Predicated region
      $region25: #{tpu_custom_call.1} parent=5 // pred_check
        _
      $region26: #{tpu_custom_call.1} parent=5 // pred_check_branch
        %166 = sbr.rel (%p163) target = $region28
      $region27: #{tpu_custom_call.1} parent=5 // pred_region
        %s167 = ssub.s32 %s19, 1
        %s168 = sand.u32 %s32, 1
        %s169 = scalar_lea.sflag [#allocation3], %s168
        %s170 = sand.u32 %s32, 1
        %s171 = smul.addr %s170, 64
        %s172 = scalar_lea.vmem [#allocation2], %s171
        // Predicated region
        $region29: #{tpu_custom_call.1} parent=27 // pred_check
          %p173 = pneg %p45
        $region30: #{tpu_custom_call.1} parent=27 // pred_check_branch
          %175 = sbr.rel (%p173) target = $region32
        $region31: #{tpu_custom_call.1} parent=27 // pred_region
          %176 = dma.done %s169, 1024
        $region32: #{tpu_custom_call.1} parent=27 // pred_fallthru
          _
        %s177 = sand.u32 %s32, 1
        %s178 = scalar_lea.sflag [#allocation3], %s177
        %s179 = sand.u32 %s32, 1
        %s180 = smul.addr %s179, 64
        %s181 = scalar_lea.vmem [#allocation2], %s180
        %p182 = pneg %p45
        %p183 = pneg %p42
        %p184 = pneg %p66
        %p185 = pneg %p63
        %p186 = pneg %p92
        %p187 = pneg %p89
        %s188 = sand.u32 %s79, 1
        %s189 = scalar_lea.sflag [#allocation4], %s188
        %s190 = sand.u32 %s79, 1
        %s191 = smul.addr %s190, 8
        %s192 = scalar_lea.vmem [#allocation5], %s191
        %p193 = pneg %p118
        %p194 = pneg %p115
        %s195 = sand.u32 %s105, 1
        %s196 = scalar_lea.sflag [#allocation7], %s195
        %s197 = sand.u32 %s105, 1
        %s198 = smul.addr %s197, 8
        %s199 = scalar_lea.vmem [#allocation6], %s198
        %s200 = smul.u32 8, %s24
        %v201 = vld [vmem:[%s172] sm:$0xff]
        %v202 = vld [vmem:[%s172 + $0x8] sm:$0xff]
        %v203 = vld [vmem:[%s172 + $0x10] sm:$0xff]
        %v204 = vld [vmem:[%s172 + $0x18] sm:$0xff]
        %v205 = vld [vmem:[%s172 + $0x20] sm:$0xff]
        %v206 = vld [vmem:[%s172 + $0x28] sm:$0xff]
        %v207 = vld [vmem:[%s172 + $0x30] sm:$0xff]
        %v208 = vld [vmem:[%s172 + $0x38] sm:$0xff]
        %v209 = vld [vmem:[%s1] sm:$0x1]
        %v211 = vlaneseq
        %v212 = vshrl.u32 %v211, 7
        %v213 = vsub.s32 0, %v212
        %v214 = vrot.slane %v209, %v213
        %v216 = vmul.f32 %v201, %v214
        %v217 = vmul.f32 %v202, %v214
        %v218 = vmul.f32 %v203, %v214
        %v219 = vmul.f32 %v204, %v214
        %v220 = vmul.f32 %v205, %v214
        %v221 = vmul.f32 %v206, %v214
        %v222 = vmul.f32 %v207, %v214
        %v223 = vmul.f32 %v208, %v214
        %vm224 = vcmask 261120
        %v225 = vsel %vm224, %v216, 0.0
        %226 = vadd.xlane.f32.xlu0 %v225
        %v227 = vpop.xlane.xlu0 %226
        %v228 = vsel %vm224, %v217, 0.0
        %229 = vadd.xlane.f32.xlu0 %v228
        %v230 = vpop.xlane.xlu0 %229
        %v231 = vsel %vm224, %v218, 0.0
        %232 = vadd.xlane.f32.xlu0 %v231
        %v233 = vpop.xlane.xlu0 %232
        %v234 = vsel %vm224, %v219, 0.0
        %235 = vadd.xlane.f32.xlu0 %v234
        %v236 = vpop.xlane.xlu0 %235
        %v237 = vsel %vm224, %v220, 0.0
        %238 = vadd.xlane.f32.xlu0 %v237
        %v239 = vpop.xlane.xlu0 %238
        %v240 = vsel %vm224, %v221, 0.0
        %241 = vadd.xlane.f32.xlu0 %v240
        %v242 = vpop.xlane.xlu0 %241
        %v243 = vsel %vm224, %v222, 0.0
        %244 = vadd.xlane.f32.xlu0 %v243
        %v245 = vpop.xlane.xlu0 %244
        %v246 = vsel %vm224, %v223, 0.0
        %247 = vadd.xlane.f32.xlu0 %v246
        %v248 = vpop.xlane.xlu0 %247
        %v249 = vtanh.pop %v227
        %v250 = vtanh.pop %v230
        %v251 = vtanh.pop %v233
        %v252 = vtanh.pop %v236
        %v253 = vtanh.pop %v239
        %v254 = vtanh.pop %v242
        %v255 = vtanh.pop %v245
        %v256 = vtanh.pop %v248
        %v265 = vlaneseq
        %v266 = vand.u32 %v265, 127
        %v267 = vlaneseq
        %v268 = vshrl.u32 %v267, 7
        %v269 = vsub.s32 %v266, %v268
        %v270 = vrot.slane %v249, %v269
        %v271 = vlaneseq
        %v272 = vshrl.u32 %v271, 7
        %v273 = vsub.s32 %v266, %v272
        %v274 = vrot.slane %v250, %v273
        %v275 = vlaneseq
        %v276 = vshrl.u32 %v275, 7
        %v277 = vsub.s32 %v266, %v276
        %v278 = vrot.slane %v251, %v277
        %v279 = vlaneseq
        %v280 = vshrl.u32 %v279, 7
        %v281 = vsub.s32 %v266, %v280
        %v282 = vrot.slane %v252, %v281
        %v283 = vlaneseq
        %v284 = vshrl.u32 %v283, 7
        %v285 = vsub.s32 %v266, %v284
        %v286 = vrot.slane %v253, %v285
        %v287 = vlaneseq
        %v288 = vshrl.u32 %v287, 7
        %v289 = vsub.s32 %v266, %v288
        %v290 = vrot.slane %v254, %v289
        %v291 = vlaneseq
        %v292 = vshrl.u32 %v291, 7
        %v293 = vsub.s32 %v266, %v292
        %v294 = vrot.slane %v255, %v293
        %v295 = vlaneseq
        %v296 = vshrl.u32 %v295, 7
        %v297 = vsub.s32 %v266, %v296
        %v298 = vrot.slane %v256, %v297
        %vm299 = vcmask 1041409
        %v300 = vsel %vm299, %v274, %v270
        %vm301 = vcmask 1042434
        %v302 = vsel %vm301, %v278, %v300
        %vm303 = vcmask 1043459
        %v304 = vsel %vm303, %v282, %v302
        %vm305 = vcmask 1044484
        %v306 = vsel %vm305, %v286, %v304
        %vm307 = vcmask 1045509
        %v308 = vsel %vm307, %v290, %v306
        %vm309 = vcmask 1046534
        %v310 = vsel %vm309, %v294, %v308
        %vm311 = vcmask 1047559
        %v312 = vsel %vm311, %v298, %v310
        %vm314 = vcmask 64512
        %v315 = vsel %vm314, %v312, -inf
        %316 = vmax.xlane.f32.xlu0 %v315
        %v317 = vpop.xlane.xlu0 %316
        %v319 = vlaneseq
        %v320 = vshrl.u32 %v319, 7
        %v321 = vsub.s32 0, %v320
        %v322 = vrot.slane %v317, %v321
        %v323 = vlaneseq
        %v324 = vshrl.u32 %v323, 7
        %v325 = vsub.s32 1, %v324
        %v326 = vrot.slane %v317, %v325
        %v327 = vlaneseq
        %v328 = vshrl.u32 %v327, 7
        %v329 = vsub.s32 2, %v328
        %v330 = vrot.slane %v317, %v329
        %v331 = vlaneseq
        %v332 = vshrl.u32 %v331, 7
        %v333 = vsub.s32 3, %v332
        %v334 = vrot.slane %v317, %v333
        %v335 = vlaneseq
        %v336 = vshrl.u32 %v335, 7
        %v337 = vsub.s32 4, %v336
        %v338 = vrot.slane %v317, %v337
        %v339 = vlaneseq
        %v340 = vshrl.u32 %v339, 7
        %v341 = vsub.s32 5, %v340
        %v342 = vrot.slane %v317, %v341
        %v343 = vlaneseq
        %v344 = vshrl.u32 %v343, 7
        %v345 = vsub.s32 6, %v344
        %v346 = vrot.slane %v317, %v345
        %v347 = vlaneseq
        %v348 = vshrl.u32 %v347, 7
        %v349 = vsub.s32 7, %v348
        %v350 = vrot.slane %v317, %v349
        %v359 = vsub.f32 %v249, %v322
        %v360 = vsub.f32 %v250, %v326
        %v361 = vsub.f32 %v251, %v330
        %v362 = vsub.f32 %v252, %v334
        %v363 = vsub.f32 %v253, %v338
        %v364 = vsub.f32 %v254, %v342
        %v365 = vsub.f32 %v255, %v346
        %v366 = vsub.f32 %v256, %v350
        %v367 = vmul.f32 %v359, 1.442695
        %v368 = vpow.pop %v367
        %v369 = vmul.f32 %v360, 1.442695
        %v370 = vpow.pop %v369
        %v371 = vmul.f32 %v361, 1.442695
        %v372 = vpow.pop %v371
        %v373 = vmul.f32 %v362, 1.442695
        %v374 = vpow.pop %v373
        %v375 = vmul.f32 %v363, 1.442695
        %v376 = vpow.pop %v375
        %v377 = vmul.f32 %v364, 1.442695
        %v378 = vpow.pop %v377
        %v379 = vmul.f32 %v365, 1.442695
        %v380 = vpow.pop %v379
        %v381 = vmul.f32 %v366, 1.442695
        %v382 = vpow.pop %v381
        %391 = vset.pattern.permute.xlu0 0
        %392 = vperm.xlu0 %391, %v368
        %v393 = vpop.permute.xlu0 %392
        %394 = vset.pattern.permute.xlu0 0
        %395 = vperm.xlu0 %394, %v370
        %v396 = vpop.permute.xlu0 %395
        %397 = vset.pattern.permute.xlu0 0
        %398 = vperm.xlu0 %397, %v372
        %v399 = vpop.permute.xlu0 %398
        %400 = vset.pattern.permute.xlu0 0
        %401 = vperm.xlu0 %400, %v374
        %v402 = vpop.permute.xlu0 %401
        %403 = vset.pattern.permute.xlu0 0
        %404 = vperm.xlu0 %403, %v376
        %v405 = vpop.permute.xlu0 %404
        %406 = vset.pattern.permute.xlu0 0
        %407 = vperm.xlu0 %406, %v378
        %v408 = vpop.permute.xlu0 %407
        %409 = vset.pattern.permute.xlu0 0
        %410 = vperm.xlu0 %409, %v380
        %v411 = vpop.permute.xlu0 %410
        %412 = vset.pattern.permute.xlu0 0
        %413 = vperm.xlu0 %412, %v382
        %v414 = vpop.permute.xlu0 %413
        %v415 = vlaneseq
        %v416 = vshrl.u32 %v415, 7
        %v417 = vsub.s32 %v266, %v416
        %v418 = vrot.slane %v393, %v417
        %v419 = vlaneseq
        %v420 = vshrl.u32 %v419, 7
        %v421 = vsub.s32 %v266, %v420
        %v422 = vrot.slane %v396, %v421
        %v423 = vlaneseq
        %v424 = vshrl.u32 %v423, 7
        %v425 = vsub.s32 %v266, %v424
        %v426 = vrot.slane %v399, %v425
        %v427 = vlaneseq
        %v428 = vshrl.u32 %v427, 7
        %v429 = vsub.s32 %v266, %v428
        %v430 = vrot.slane %v402, %v429
        %v431 = vlaneseq
        %v432 = vshrl.u32 %v431, 7
        %v433 = vsub.s32 %v266, %v432
        %v434 = vrot.slane %v405, %v433
        %v435 = vlaneseq
        %v436 = vshrl.u32 %v435, 7
        %v437 = vsub.s32 %v266, %v436
        %v438 = vrot.slane %v408, %v437
        %v439 = vlaneseq
        %v440 = vshrl.u32 %v439, 7
        %v441 = vsub.s32 %v266, %v440
        %v442 = vrot.slane %v411, %v441
        %v443 = vlaneseq
        %v444 = vshrl.u32 %v443, 7
        %v445 = vsub.s32 %v266, %v444
        %v446 = vrot.slane %v414, %v445
        %v447 = vsel %vm299, %v422, %v418
        %v448 = vsel %vm301, %v426, %v447
        %v449 = vsel %vm303, %v430, %v448
        %v450 = vsel %vm305, %v434, %v449
        %v451 = vsel %vm307, %v438, %v450
        %v452 = vsel %vm309, %v442, %v451
        %v453 = vsel %vm311, %v446, %v452
        %v455 = vsel %vm314, %v453, 0.0
        %456 = vadd.xlane.f32.xlu0 %v455
        %v457 = vpop.xlane.xlu0 %456
        %v458 = vrcp.pop %v457
        %v459 = vmul.f32 1.0, %v458
        %v461 = vlaneseq
        %v462 = vshrl.u32 %v461, 7
        %v463 = vsub.s32 0, %v462
        %v464 = vrot.slane %v459, %v463
        %v465 = vlaneseq
        %v466 = vshrl.u32 %v465, 7
        %v467 = vsub.s32 1, %v466
        %v468 = vrot.slane %v459, %v467
        %v469 = vlaneseq
        %v470 = vshrl.u32 %v469, 7
        %v471 = vsub.s32 2, %v470
        %v472 = vrot.slane %v459, %v471
        %v473 = vlaneseq
        %v474 = vshrl.u32 %v473, 7
        %v475 = vsub.s32 3, %v474
        %v476 = vrot.slane %v459, %v475
        %v477 = vlaneseq
        %v478 = vshrl.u32 %v477, 7
        %v479 = vsub.s32 4, %v478
        %v480 = vrot.slane %v459, %v479
        %v481 = vlaneseq
        %v482 = vshrl.u32 %v481, 7
        %v483 = vsub.s32 5, %v482
        %v484 = vrot.slane %v459, %v483
        %v485 = vlaneseq
        %v486 = vshrl.u32 %v485, 7
        %v487 = vsub.s32 6, %v486
        %v488 = vrot.slane %v459, %v487
        %v489 = vlaneseq
        %v490 = vshrl.u32 %v489, 7
        %v491 = vsub.s32 7, %v490
        %v492 = vrot.slane %v459, %v491
        %v501 = vmul.f32 %v368, %v464
        %v502 = vmul.f32 %v370, %v468
        %v503 = vmul.f32 %v372, %v472
        %v504 = vmul.f32 %v374, %v476
        %v505 = vmul.f32 %v376, %v480
        %v506 = vmul.f32 %v378, %v484
        %v507 = vmul.f32 %v380, %v488
        %v508 = vmul.f32 %v382, %v492
        %v517 = vmul.f32 %v393, %v201
        %v518 = vmul.f32 %v396, %v202
        %v519 = vmul.f32 %v399, %v203
        %v520 = vmul.f32 %v402, %v204
        %v521 = vmul.f32 %v405, %v205
        %v522 = vmul.f32 %v408, %v206
        %v523 = vmul.f32 %v411, %v207
        %v524 = vmul.f32 %v414, %v208
        %v525 = vsel %vm224, %v517, 0.0
        %v526 = vrot.slane %v525, 4
        %v527 = vadd.f32 %v525, %v526
        %v528 = vrot.slane %v527, 2
        %v529 = vadd.f32 %v527, %v528
        %v530 = vrot.slane %v529, 1
        %v531 = vadd.f32 %v529, %v530
        %v532 = vsel %vm224, %v518, 0.0
        %v533 = vrot.slane %v532, 4
        %v534 = vadd.f32 %v532, %v533
        %v535 = vrot.slane %v534, 2
        %v536 = vadd.f32 %v534, %v535
        %v537 = vrot.slane %v536, 1
        %v538 = vadd.f32 %v536, %v537
        %v539 = vsel %vm224, %v519, 0.0
        %v540 = vrot.slane %v539, 4
        %v541 = vadd.f32 %v539, %v540
        %v542 = vrot.slane %v541, 2
        %v543 = vadd.f32 %v541, %v542
        %v544 = vrot.slane %v543, 1
        %v545 = vadd.f32 %v543, %v544
        %v546 = vsel %vm224, %v520, 0.0
        %v547 = vrot.slane %v546, 4
        %v548 = vadd.f32 %v546, %v547
        %v549 = vrot.slane %v548, 2
        %v550 = vadd.f32 %v548, %v549
        %v551 = vrot.slane %v550, 1
        %v552 = vadd.f32 %v550, %v551
        %v553 = vsel %vm224, %v521, 0.0
        %v554 = vrot.slane %v553, 4
        %v555 = vadd.f32 %v553, %v554
        %v556 = vrot.slane %v555, 2
        %v557 = vadd.f32 %v555, %v556
        %v558 = vrot.slane %v557, 1
        %v559 = vadd.f32 %v557, %v558
        %v560 = vsel %vm224, %v522, 0.0
        %v561 = vrot.slane %v560, 4
        %v562 = vadd.f32 %v560, %v561
        %v563 = vrot.slane %v562, 2
        %v564 = vadd.f32 %v562, %v563
        %v565 = vrot.slane %v564, 1
        %v566 = vadd.f32 %v564, %v565
        %v567 = vsel %vm224, %v523, 0.0
        %v568 = vrot.slane %v567, 4
        %v569 = vadd.f32 %v567, %v568
        %v570 = vrot.slane %v569, 2
        %v571 = vadd.f32 %v569, %v570
        %v572 = vrot.slane %v571, 1
        %v573 = vadd.f32 %v571, %v572
        %v574 = vsel %vm224, %v524, 0.0
        %v575 = vrot.slane %v574, 4
        %v576 = vadd.f32 %v574, %v575
        %v577 = vrot.slane %v576, 2
        %v578 = vadd.f32 %v576, %v577
        %v579 = vrot.slane %v578, 1
        %v580 = vadd.f32 %v578, %v579
        %v581 = vrot.slane %v459, 1
        %v582 = vrot.slane %v459, 2
        %v583 = vrot.slane %v459, 3
        %v584 = vrot.slane %v459, 4
        %v585 = vrot.slane %v459, 5
        %v586 = vrot.slane %v459, 6
        %v587 = vrot.slane %v459, 7
        %v596 = vmul.f32 %v531, %v459
        %v597 = vmul.f32 %v538, %v581
        %v598 = vmul.f32 %v545, %v582
        %v599 = vmul.f32 %v552, %v583
        %v600 = vmul.f32 %v559, %v584
        %v601 = vmul.f32 %v566, %v585
        %v602 = vmul.f32 %v573, %v586
        %v603 = vmul.f32 %v580, %v587
        %v612 = vrot.slane %v597, 7
        %v613 = vsel %vm299, %v612, %v596
        %v614 = vrot.slane %v598, 6
        %v615 = vsel %vm301, %v614, %v613
        %v616 = vrot.slane %v599, 5
        %v617 = vsel %vm303, %v616, %v615
        %v618 = vrot.slane %v600, 4
        %v619 = vsel %vm305, %v618, %v617
        %v620 = vrot.slane %v601, 3
        %v621 = vsel %vm307, %v620, %v619
        %v622 = vrot.slane %v602, 2
        %v623 = vsel %vm309, %v622, %v621
        %v624 = vrot.slane %v603, 1
        %v625 = vsel %vm311, %v624, %v623
        %v627 = vsel %vm224, %v625, 0.0
        %636 = vset.pattern.permute.xlu0 0
        %637 = vperm.xlu0 %636, %v501
        %v638 = vpop.permute.xlu0 %637
        %639 = vset.pattern.permute.xlu0 0
        %640 = vperm.xlu0 %639, %v502
        %v641 = vpop.permute.xlu0 %640
        %642 = vset.pattern.permute.xlu0 0
        %643 = vperm.xlu0 %642, %v503
        %v644 = vpop.permute.xlu0 %643
        %645 = vset.pattern.permute.xlu0 0
        %646 = vperm.xlu0 %645, %v504
        %v647 = vpop.permute.xlu0 %646
        %648 = vset.pattern.permute.xlu0 0
        %649 = vperm.xlu0 %648, %v505
        %v650 = vpop.permute.xlu0 %649
        %651 = vset.pattern.permute.xlu0 0
        %652 = vperm.xlu0 %651, %v506
        %v653 = vpop.permute.xlu0 %652
        %654 = vset.pattern.permute.xlu0 0
        %655 = vperm.xlu0 %654, %v507
        %v656 = vpop.permute.xlu0 %655
        %657 = vset.pattern.permute.xlu0 0
        %658 = vperm.xlu0 %657, %v508
        %v659 = vpop.permute.xlu0 %658
        %v660 = vlaneseq
        %v661 = vshrl.u32 %v660, 7
        %v662 = vsub.s32 %v266, %v661
        %v663 = vrot.slane %v638, %v662
        %v664 = vlaneseq
        %v665 = vshrl.u32 %v664, 7
        %v666 = vsub.s32 %v266, %v665
        %v667 = vrot.slane %v641, %v666
        %v668 = vlaneseq
        %v669 = vshrl.u32 %v668, 7
        %v670 = vsub.s32 %v266, %v669
        %v671 = vrot.slane %v644, %v670
        %v672 = vlaneseq
        %v673 = vshrl.u32 %v672, 7
        %v674 = vsub.s32 %v266, %v673
        %v675 = vrot.slane %v647, %v674
        %v676 = vlaneseq
        %v677 = vshrl.u32 %v676, 7
        %v678 = vsub.s32 %v266, %v677
        %v679 = vrot.slane %v650, %v678
        %v680 = vlaneseq
        %v681 = vshrl.u32 %v680, 7
        %v682 = vsub.s32 %v266, %v681
        %v683 = vrot.slane %v653, %v682
        %v684 = vlaneseq
        %v685 = vshrl.u32 %v684, 7
        %v686 = vsub.s32 %v266, %v685
        %v687 = vrot.slane %v656, %v686
        %v688 = vlaneseq
        %v689 = vshrl.u32 %v688, 7
        %v690 = vsub.s32 %v266, %v689
        %v691 = vrot.slane %v659, %v690
        %v692 = vsel %vm299, %v667, %v663
        %v693 = vsel %vm301, %v671, %v692
        %v694 = vsel %vm303, %v675, %v693
        %v695 = vsel %vm305, %v679, %v694
        %v696 = vsel %vm307, %v683, %v695
        %v697 = vsel %vm309, %v687, %v696
        %v698 = vsel %vm311, %v691, %v697
        %v700 = vsel %vm314, %v698, 0.0
        %701 = vst [vmem:[%s192] sm:$0xff] %v627
        %702 = vst [vmem:[%s199] sm:$0xff] %v700
        %s703 = sand.u32 %s79, 1
        %s704 = scalar_lea.sflag [#allocation4], %s703
        %s705 = sand.u32 %s79, 1
        %s706 = smul.addr %s705, 8
        %s707 = scalar_lea.vmem [#allocation5], %s706
        %s708 = sand.u32 %s105, 1
        %s709 = scalar_lea.sflag [#allocation7], %s708
        %s710 = sand.u32 %s105, 1
        %s711 = smul.addr %s710, 8
        %s712 = scalar_lea.vmem [#allocation6], %s711
        // Predicated region
        $region33: #{tpu_custom_call.1} parent=27 // pred_check
          %p713 = pneg %p89
        $region34: #{tpu_custom_call.1} parent=27 // pred_check_branch
          %715 = sbr.rel (%p713) target = $region36
        $region35: #{tpu_custom_call.1} parent=27 // pred_region
          %s717 = ssub.s32 128, 128
          %718 = vsyncadd %s704, %s717
          %s719 = smul.addr %s24, 128
          %s720 = scalar_lea.hbm %s2, %s719
          %s722 = sshll.u32 %s707, 4
          %s723 = int_to_ptr.vmem [resolvable:$true] %s722
          %725 = dma.vmem_to_hbm [thread:$0]  %s723, 128, %s720, %s704
        $region36: #{tpu_custom_call.1} parent=27 // pred_fallthru
          _
        // Predicated region
        $region37: #{tpu_custom_call.1} parent=27 // pred_check
          %p726 = pneg %p115
        $region38: #{tpu_custom_call.1} parent=27 // pred_check_branch
          %728 = sbr.rel (%p726) target = $region40
        $region39: #{tpu_custom_call.1} parent=27 // pred_region
          %s730 = ssub.s32 128, 128
          %731 = vsyncadd %s709, %s730
          %s732 = smul.addr %s24, 128
          %s733 = scalar_lea.hbm %s3, %s732
          %s735 = sshll.u32 %s712, 4
          %s736 = int_to_ptr.vmem [resolvable:$true] %s735
          %738 = dma.vmem_to_hbm [thread:$0]  %s736, 128, %s733, %s709
        $region40: #{tpu_custom_call.1} parent=27 // pred_fallthru
          _
      $region28: #{tpu_custom_call.1} parent=5 // pred_fallthru
        _
      %p739 = scmp.le.s32.totalorder 2, %s19
      // Predicated region
      $region41: #{tpu_custom_call.1} parent=5 // pred_check
        %p740 = pneg %p739
      $region42: #{tpu_custom_call.1} parent=5 // pred_check_branch
        %742 = sbr.rel (%p740) target = $region44
      $region43: #{tpu_custom_call.1} parent=5 // pred_region
        %s743 = ssub.s32 %s19, 2
        // Predicated region
        $region45: #{tpu_custom_call.1} parent=43 // pred_check
          %p744 = pneg %p95
        $region46: #{tpu_custom_call.1} parent=43 // pred_check_branch
          %746 = sbr.rel (%p744) target = $region48
        $region47: #{tpu_custom_call.1} parent=43 // pred_region
          %s747 = sand.u32 %s80, 1
          %s748 = scalar_lea.sflag [#allocation4], %s747
          %s749 = sand.u32 %s80, 1
          %s750 = smul.addr %s749, 8
          %s751 = scalar_lea.vmem [#allocation5], %s750
          %752 = dma.done %s748, 128
        $region48: #{tpu_custom_call.1} parent=43 // pred_fallthru
          _
        // Predicated region
        $region49: #{tpu_custom_call.1} parent=43 // pred_check
          %p753 = pneg %p121
        $region50: #{tpu_custom_call.1} parent=43 // pred_check_branch
          %755 = sbr.rel (%p753) target = $region52
        $region51: #{tpu_custom_call.1} parent=43 // pred_region
          %s756 = sand.u32 %s106, 1
          %s757 = scalar_lea.sflag [#allocation7], %s756
          %s758 = sand.u32 %s106, 1
          %s759 = smul.addr %s758, 8
          %s760 = scalar_lea.vmem [#allocation6], %s759
          %761 = dma.done %s757, 128
        $region52: #{tpu_custom_call.1} parent=43 // pred_fallthru
          _
      $region44: #{tpu_custom_call.1} parent=5 // pred_fallthru
        _
    $region6: #{tpu_custom_call.1} parent=1 // loop_footer
      %s23 = sadd.s32 1, %s19
    $region7: #{tpu_custom_call.1} parent=1 // loop_footer_branch
      %18 = sbr.rel target = $region3
    $region8: #{tpu_custom_call.1} parent=1 // loop_exit
      _
    %762 = vsyncpa [#allocation3], 1
    %s763 = scalar_lea.sflag [#allocation3], 1
    %764 = vsyncpa %s763, 1
    %765 = vsyncpa [#allocation4], 1
    %s766 = scalar_lea.sflag [#allocation4], 1
    %767 = vsyncpa %s766, 1
    %768 = vsyncpa [#allocation7], 1
    %s769 = scalar_lea.sflag [#allocation7], 1
    %770 = vsyncpa %s769, 1

</llo_original>
